<compile_context>
chip_gen: v5e
topology: v5e:2x2
jax: 0.10.0
libtpu: 0.0.40
codegen_flags: <defaults>
</compile_context>

<pallas_src>
import jax
import jax.numpy as jnp
from jax.experimental import pallas as pl
from jax.experimental.pallas import tpu as pltpu

# Lane-aligned (multiples of 128) padded widths.
D_IN = 28 * 28        # 784
D_IN_PAD = 896        # 7 * 128
H1_PAD = 128          # 64  -> 128
H2 = 128
H3_PAD = 128          # 64  -> 128
N_OUT = 10            # kept narrow; output stream is tiny


def mnist_kernel(x_ref, w1_ref, b1_ref, w2_ref, b2_ref,
                 w3_ref, b3_ref, w4_ref, b4_ref, o_ref):
    # x tile: (TM, 896) bf16; weights bf16; biases (1, N) f32.
    x = x_ref[...]

    h1 = jnp.dot(x, w1_ref[...], preferred_element_type=jnp.float32) + b1_ref[...]
    h1 = jnp.maximum(h1, 0.0).astype(jnp.bfloat16)                    # (TM, 128)

    h2 = jnp.dot(h1, w2_ref[...], preferred_element_type=jnp.float32) + b2_ref[...]
    h2 = jnp.maximum(h2, 0.0).astype(jnp.bfloat16)                    # (TM, 128)

    h3 = jnp.dot(h2, w3_ref[...], preferred_element_type=jnp.float32) + b3_ref[...]
    h3 = jnp.maximum(h3, 0.0).astype(jnp.bfloat16)                    # (TM, 128)

    logits = jnp.dot(h3, w4_ref[...], preferred_element_type=jnp.float32) + b4_ref[...]

    # Custom softmax from the module.  Per-row max gives identical
    # probabilities to the global-max version (constant row shift cancels)
    # and is numerically robust + tiling-friendly.
    m = jnp.max(logits, axis=-1, keepdims=True)
    e = jnp.exp(logits - m)
    inv = pl.reciprocal(jnp.sum(e, axis=-1, keepdims=True), approx=True)
    o_ref[...] = e * inv                                              # (TM, 10)


def _round_up(n, m):
    return ((n + m - 1) // m) * m


def prep_params(params):
    """Pad to lane-aligned shapes and cast: weights -> bf16, biases -> f32 (1, N)."""
    (w1, b1), (w2, b2), (w3, b3), (w4, b4) = params

    def pad2(w, rows, cols):
        return jnp.pad(w, ((0, rows - w.shape[0]), (0, cols - w.shape[1])))

    w1p = pad2(w1, D_IN_PAD, H1_PAD).astype(jnp.bfloat16)   # (896, 128)
    w2p = pad2(w2, H1_PAD, H2).astype(jnp.bfloat16)         # (128, 128)
    w3p = pad2(w3, H2, H3_PAD).astype(jnp.bfloat16)         # (128, 128)
    w4p = pad2(w4, H3_PAD, N_OUT).astype(jnp.bfloat16)      # (128, 10)

    b1p = jnp.pad(b1, (0, H1_PAD - b1.shape[0])).reshape(1, -1).astype(jnp.float32)
    b2p = b2.reshape(1, -1).astype(jnp.float32)
    b3p = jnp.pad(b3, (0, H3_PAD - b3.shape[0])).reshape(1, -1).astype(jnp.float32)
    b4p = b4.reshape(1, -1).astype(jnp.float32)
    return (w1p, b1p, w2p, b2p, w3p, b3p, w4p, b4p)


def mnist_forward(x_nchw, params, *, tm=None):
    """x_nchw: (B, 1, 28, 28) -> (B, 10) float32 probabilities."""
    B = x_nchw.shape[0]
    x = x_nchw.reshape(B, D_IN).astype(jnp.float32)
    # Pad features 784 -> 896 (lane multiple) and cast to bf16: halves the
    # dominant HBM stream of this DMA-bound kernel.
    x = jnp.pad(x, ((0, 0), (0, D_IN_PAD - D_IN))).astype(jnp.bfloat16)

    # Batch tile: big enough to amortize per-step overhead, small enough that
    # the double-buffered x tiles (+ ~0.3 MiB resident weights + activations)
    # stay far below v7x's 64 MiB VMEM.
    if tm is None:
        tm = min(1024, _round_up(B, 8))
    Bp = _round_up(B, tm)
    if Bp != B:
        x = jnp.pad(x, ((0, Bp - B), (0, 0)))   # padded rows are harmless (sliced off)

    w1p, b1p, w2p, b2p, w3p, b3p, w4p, b4p = prep_params(params)

    const = lambda i: (0, 0)   # weights/biases: same block every grid step -> DMA'd once
    out = pl.pallas_call(
        mnist_kernel,
        out_shape=jax.ShapeDtypeStruct((Bp, N_OUT), jnp.float32),
        grid=(Bp // tm,),
        in_specs=[
            pl.BlockSpec((tm, D_IN_PAD), lambda i: (i, 0)),   # x tiles stream through
            pl.BlockSpec((D_IN_PAD, H1_PAD), const),
            pl.BlockSpec((1, H1_PAD), const),
            pl.BlockSpec((H1_PAD, H2), const),
            pl.BlockSpec((1, H2), const),
            pl.BlockSpec((H2, H3_PAD), const),
            pl.BlockSpec((1, H3_PAD), const),
            pl.BlockSpec((H3_PAD, N_OUT), const),
            pl.BlockSpec((1, N_OUT), const),
        ],
        out_specs=pl.BlockSpec((tm, N_OUT), lambda i: (i, 0)),
        compiler_params=pltpu.CompilerParams(
            dimension_semantics=("parallel",),   # megacore batch split on v7x
        ),
    )(x, w1p, b1p, w2p, b2p, w3p, b3p, w4p, b4p)
    return out[:B]


def init_params(key):
    """Deterministic init matching PyTorch nn.Linear default U(-1/sqrt(in), 1/sqrt(in))."""
    sizes = [(D_IN, 64), (64, 128), (128, 64), (64, 10)]
    params = []
    keys = jax.random.split(key, 2 * len(sizes))
    for i, (fan_in, fan_out) in enumerate(sizes):
        bound = 1.0 / (fan_in ** 0.5)
        w = jax.random.uniform(keys[2 * i], (fan_in, fan_out),
                               minval=-bound, maxval=bound, dtype=jnp.float32)
        b = jax.random.uniform(keys[2 * i + 1], (fan_out,),
                               minval=-bound, maxval=bound, dtype=jnp.float32)
        params.append((w, b))
    return params


if __name__ == "__main__":
    key = jax.random.PRNGKey(0)
    k_x, k_p = jax.random.split(key)

    B = 8
    x = jax.random.normal(k_x, (B, 1, 28, 28), dtype=jnp.float32)
    params = init_params(k_p)

    out = mnist_forward(x, params)
    out = jax.block_until_ready(out)

    # Sanity: valid probability rows (tolerance loosened for bf16 matmuls +
    # approx reciprocal).
    assert out.shape == (B, 10)
    assert bool(jnp.all(jnp.isfinite(out)))
    assert bool(jnp.all(out >= 0.0))
    row_sums = jnp.sum(out, axis=-1)
    assert bool(jnp.all(jnp.abs(row_sums - 1.0) < 1e-2))
    print("KERNEL_OK")
</pallas_src>

<mosaic_0001>
module attributes {stable_mosaic.version = 11 : i64} {
  func.func @mnist_kernel(%arg0: i32, %arg1: memref<8x896xbf16, #tpu.memory_space<vmem>>, %arg2: memref<896x128xbf16, #tpu.memory_space<vmem>>, %arg3: memref<1x128xf32, #tpu.memory_space<vmem>>, %arg4: memref<128x128xbf16, #tpu.memory_space<vmem>>, %arg5: memref<1x128xf32, #tpu.memory_space<vmem>>, %arg6: memref<128x128xbf16, #tpu.memory_space<vmem>>, %arg7: memref<1x128xf32, #tpu.memory_space<vmem>>, %arg8: memref<128x10xbf16, #tpu.memory_space<vmem>>, %arg9: memref<1x10xf32, #tpu.memory_space<vmem>>, %arg10: memref<8x10xf32, #tpu.memory_space<vmem>>) attributes {dimension_semantics = [#tpu.dimension_semantics<parallel>], iteration_bounds = array<i64: 1>, scalar_prefetch = 0 : i64, scratch_operands = 0 : i64, tpu.core_type = #tpu.core_type<tc>, window_params = [{transform_indices = @transform_0, window_bounds = array<i64: 8, 896>}, {pipeline_mode = #tpu.pipeline_mode<synchronous>, transform_indices = @transform_1, window_bounds = array<i64: 896, 128>}, {pipeline_mode = #tpu.pipeline_mode<synchronous>, transform_indices = @transform_2, window_bounds = array<i64: 1, 128>}, {pipeline_mode = #tpu.pipeline_mode<synchronous>, transform_indices = @transform_3, window_bounds = array<i64: 128, 128>}, {pipeline_mode = #tpu.pipeline_mode<synchronous>, transform_indices = @transform_4, window_bounds = array<i64: 1, 128>}, {pipeline_mode = #tpu.pipeline_mode<synchronous>, transform_indices = @transform_5, window_bounds = array<i64: 128, 128>}, {pipeline_mode = #tpu.pipeline_mode<synchronous>, transform_indices = @transform_6, window_bounds = array<i64: 1, 128>}, {pipeline_mode = #tpu.pipeline_mode<synchronous>, transform_indices = @transform_7, window_bounds = array<i64: 128, 10>}, {pipeline_mode = #tpu.pipeline_mode<synchronous>, transform_indices = @transform_8, window_bounds = array<i64: 1, 10>}, {transform_indices = @transform_9, window_bounds = array<i64: 8, 10>}]} {
    %c0 = arith.constant 0 : index
    %c0_0 = arith.constant 0 : index
    %0 = vector.load %arg1[%c0, %c0_0] : memref<8x896xbf16, #tpu.memory_space<vmem>>, vector<8x896xbf16>
    %c0_1 = arith.constant 0 : index
    %c0_2 = arith.constant 0 : index
    %1 = vector.load %arg2[%c0_1, %c0_2] : memref<896x128xbf16, #tpu.memory_space<vmem>>, vector<896x128xbf16>
    %cst = arith.constant dense<0.000000e+00> : vector<8x128xf32>
    %2 = tpu.matmul %0, %1, %cst {dimension_numbers = #tpu.dot_dimension_numbers<[1], [0], [0], [1], [0, 0, 1, 1], [], []>} : vector<8x896xbf16>, vector<896x128xbf16>, vector<8x128xf32> -> vector<8x128xf32>
    %c0_3 = arith.constant 0 : index
    %c0_4 = arith.constant 0 : index
    %3 = vector.load %arg3[%c0_3, %c0_4] : memref<1x128xf32, #tpu.memory_space<vmem>>, vector<1x128xf32>
    %4 = vector.broadcast %3 : vector<1x128xf32> to vector<8x128xf32>
    %5 = arith.addf %2, %4 : vector<8x128xf32>
    %cst_5 = arith.constant 0.000000e+00 : f32
    %6 = vector.broadcast %cst_5 : f32 to vector<8x128xf32>
    %7 = arith.maximumf %5, %6 : vector<8x128xf32>
    %8 = arith.truncf %7 : vector<8x128xf32> to vector<8x128xbf16>
    %c0_6 = arith.constant 0 : index
    %c0_7 = arith.constant 0 : index
    %9 = vector.load %arg4[%c0_6, %c0_7] : memref<128x128xbf16, #tpu.memory_space<vmem>>, vector<128x128xbf16>
    %cst_8 = arith.constant dense<0.000000e+00> : vector<8x128xf32>
    %10 = tpu.matmul %8, %9, %cst_8 {dimension_numbers = #tpu.dot_dimension_numbers<[1], [0], [0], [1], [0, 0, 1, 1], [], []>} : vector<8x128xbf16>, vector<128x128xbf16>, vector<8x128xf32> -> vector<8x128xf32>
    %c0_9 = arith.constant 0 : index
    %c0_10 = arith.constant 0 : index
    %11 = vector.load %arg5[%c0_9, %c0_10] : memref<1x128xf32, #tpu.memory_space<vmem>>, vector<1x128xf32>
    %12 = vector.broadcast %11 : vector<1x128xf32> to vector<8x128xf32>
    %13 = arith.addf %10, %12 : vector<8x128xf32>
    %cst_11 = arith.constant 0.000000e+00 : f32
    %14 = vector.broadcast %cst_11 : f32 to vector<8x128xf32>
    %15 = arith.maximumf %13, %14 : vector<8x128xf32>
    %16 = arith.truncf %15 : vector<8x128xf32> to vector<8x128xbf16>
    %c0_12 = arith.constant 0 : index
    %c0_13 = arith.constant 0 : index
    %17 = vector.load %arg6[%c0_12, %c0_13] : memref<128x128xbf16, #tpu.memory_space<vmem>>, vector<128x128xbf16>
    %cst_14 = arith.constant dense<0.000000e+00> : vector<8x128xf32>
    %18 = tpu.matmul %16, %17, %cst_14 {dimension_numbers = #tpu.dot_dimension_numbers<[1], [0], [0], [1], [0, 0, 1, 1], [], []>} : vector<8x128xbf16>, vector<128x128xbf16>, vector<8x128xf32> -> vector<8x128xf32>
    %c0_15 = arith.constant 0 : index
    %c0_16 = arith.constant 0 : index
    %19 = vector.load %arg7[%c0_15, %c0_16] : memref<1x128xf32, #tpu.memory_space<vmem>>, vector<1x128xf32>
    %20 = vector.broadcast %19 : vector<1x128xf32> to vector<8x128xf32>
    %21 = arith.addf %18, %20 : vector<8x128xf32>
    %cst_17 = arith.constant 0.000000e+00 : f32
    %22 = vector.broadcast %cst_17 : f32 to vector<8x128xf32>
    %23 = arith.maximumf %21, %22 : vector<8x128xf32>
    %24 = arith.truncf %23 : vector<8x128xf32> to vector<8x128xbf16>
    %c0_18 = arith.constant 0 : index
    %c0_19 = arith.constant 0 : index
    %25 = vector.load %arg8[%c0_18, %c0_19] : memref<128x10xbf16, #tpu.memory_space<vmem>>, vector<128x10xbf16>
    %cst_20 = arith.constant dense<0.000000e+00> : vector<8x10xf32>
    %26 = tpu.matmul %24, %25, %cst_20 {dimension_numbers = #tpu.dot_dimension_numbers<[1], [0], [0], [1], [0, 0, 1, 1], [], []>} : vector<8x128xbf16>, vector<128x10xbf16>, vector<8x10xf32> -> vector<8x10xf32>
    %c0_21 = arith.constant 0 : index
    %c0_22 = arith.constant 0 : index
    %27 = vector.load %arg9[%c0_21, %c0_22] : memref<1x10xf32, #tpu.memory_space<vmem>>, vector<1x10xf32>
    %28 = vector.broadcast %27 : vector<1x10xf32> to vector<8x10xf32>
    %29 = arith.addf %26, %28 : vector<8x10xf32>
    %cst_23 = arith.constant dense<0xFF800000> : vector<8xf32>
    %30 = vector.multi_reduction <maximumf>, %29, %cst_23 [1] : vector<8x10xf32> to vector<8xf32>
    %31 = vector.shape_cast %30 : vector<8xf32> to vector<8x1xf32>
    %32 = vector.broadcast %31 : vector<8x1xf32> to vector<8x10xf32>
    %33 = arith.subf %29, %32 : vector<8x10xf32>
    %34 = math.exp %33 : vector<8x10xf32>
    %cst_24 = arith.constant dense<0.000000e+00> : vector<8xf32>
    %35 = vector.multi_reduction <add>, %34, %cst_24 [1] : vector<8x10xf32> to vector<8xf32>
    %36 = vector.shape_cast %35 : vector<8xf32> to vector<8x1xf32>
    %37 = tpu.reciprocal %36 {approx = true} : vector<8x1xf32> -> vector<8x1xf32>
    %38 = vector.broadcast %37 : vector<8x1xf32> to vector<8x10xf32>
    %39 = arith.mulf %34, %38 : vector<8x10xf32>
    %c0_25 = arith.constant 0 : index
    %c0_26 = arith.constant 0 : index
    %40 = vector.load %arg10[%c0_25, %c0_26] : memref<8x10xf32, #tpu.memory_space<vmem>>, vector<8x10xf32>
    tpu.vector_store %arg10[%c0_25, %c0_26], %39 {strides = array<i32>} : memref<8x10xf32, #tpu.memory_space<vmem>>, vector<8x10xf32>,
    return
  }
  func.func @transform_0(%arg0: i32) -> (i32, i32) {
    %c0_i32 = arith.constant 0 : i32
    %c0_i32_0 = arith.constant 0 : i32
    return %arg0, %c0_i32 : i32, i32
  }
  func.func @transform_1(%arg0: i32) -> (i32, i32) {
    %c0_i32 = arith.constant 0 : i32
    %c0_i32_0 = arith.constant 0 : i32
    %c0_i32_1 = arith.constant 0 : i32
    return %c0_i32, %c0_i32_0 : i32, i32
  }
  func.func @transform_2(%arg0: i32) -> (i32, i32) {
    %c0_i32 = arith.constant 0 : i32
    %c0_i32_0 = arith.constant 0 : i32
    %c0_i32_1 = arith.constant 0 : i32
    return %c0_i32, %c0_i32_0 : i32, i32
  }
  func.func @transform_3(%arg0: i32) -> (i32, i32) {
    %c0_i32 = arith.constant 0 : i32
    %c0_i32_0 = arith.constant 0 : i32
    %c0_i32_1 = arith.constant 0 : i32
    return %c0_i32, %c0_i32_0 : i32, i32
  }
  func.func @transform_4(%arg0: i32) -> (i32, i32) {
    %c0_i32 = arith.constant 0 : i32
    %c0_i32_0 = arith.constant 0 : i32
    %c0_i32_1 = arith.constant 0 : i32
    return %c0_i32, %c0_i32_0 : i32, i32
  }
  func.func @transform_5(%arg0: i32) -> (i32, i32) {
    %c0_i32 = arith.constant 0 : i32
    %c0_i32_0 = arith.constant 0 : i32
    %c0_i32_1 = arith.constant 0 : i32
    return %c0_i32, %c0_i32_0 : i32, i32
  }
  func.func @transform_6(%arg0: i32) -> (i32, i32) {
    %c0_i32 = arith.constant 0 : i32
    %c0_i32_0 = arith.constant 0 : i32
    %c0_i32_1 = arith.constant 0 : i32
    return %c0_i32, %c0_i32_0 : i32, i32
  }
  func.func @transform_7(%arg0: i32) -> (i32, i32) {
    %c0_i32 = arith.constant 0 : i32
    %c0_i32_0 = arith.constant 0 : i32
    %c0_i32_1 = arith.constant 0 : i32
    return %c0_i32, %c0_i32_0 : i32, i32
  }
  func.func @transform_8(%arg0: i32) -> (i32, i32) {
    %c0_i32 = arith.constant 0 : i32
    %c0_i32_0 = arith.constant 0 : i32
    %c0_i32_1 = arith.constant 0 : i32
    return %c0_i32, %c0_i32_0 : i32, i32
  }
  func.func @transform_9(%arg0: i32) -> (i32, i32) {
    %c0_i32 = arith.constant 0 : i32
    %c0_i32_0 = arith.constant 0 : i32
    return %arg0, %c0_i32 : i32, i32
  }
}

</mosaic_0001>

<llo_original>
// kernel: tpu_custom_call.1
$region0: #{tpu_custom_call.1}
  #allocation0 [shape = 'u32[]', space=smem, size = 0x4, offset = 0x4, fixed_abs, tag = 'smem constant byte address 0x4 - core index']
  #allocation1 [shape = 'u32[72,128]{1,0:T(1,128)}', space=vmem, size = 0x9000, scoped, tag = 'internal scratch']
  %s0 = inlined_call_operand.hbm [shape: bf16[8,896], index: 0, kind: input, shape index: {}]
  %s1 = inlined_call_operand.hbm [shape: bf16[896,128], index: 1, kind: input, shape index: {}]
  %s2 = inlined_call_operand.vmem [shape: f32[1,128], index: 2, kind: input, shape index: {}]
  %s3 = inlined_call_operand.vmem [shape: bf16[128,128], index: 3, kind: input, shape index: {}]
  %s4 = inlined_call_operand.vmem [shape: f32[1,128], index: 4, kind: input, shape index: {}]
  %s5 = inlined_call_operand.hbm [shape: bf16[128,128], index: 5, kind: input, shape index: {}]
  %s6 = inlined_call_operand.vmem [shape: f32[1,128], index: 6, kind: input, shape index: {}]
  %s7 = inlined_call_operand.vmem [shape: bf16[128,10], index: 7, kind: input, shape index: {}]
  %s8 = inlined_call_operand.vmem [shape: f32[1,10], index: 8, kind: input, shape index: {}]
  %s9 = inlined_call_operand.hbm [shape: f32[8,10], index: 9, kind: output, shape index: {}]
  %s10 = sld [smem:[#allocation0]]
  $region58: #{tpu_custom_call.1} parent=0
    _
  %s12 = ssub.s32 1, %s10
  %s13 = scalar_select 0, %s12, %s10
  $region1: #{tpu_custom_call.1} parent=0
    #allocation2 [shape = 'u8[14336]{0}', space=vmem, size = 0x3800, scoped, tag = 'input window, operand 0, single buffered']
    #allocation3 [shape = 's32[1]{0}', space=sflag, size = 0x4, scoped, tag = 'scoped memory for tpu_custom_call.1']
    #allocation4 [shape = 's32[1]{0}', space=sflag, size = 0x4, scoped, tag = 'scoped memory for tpu_custom_call.1']
    #allocation5 [shape = 'u8[229376]{0}', space=vmem, size = 0x38000, scoped, tag = 'input window, operand 1, single buffered']
    #allocation6 [shape = 's32[1]{0}', space=sflag, size = 0x4, scoped, tag = 'scoped memory for tpu_custom_call.1']
    #allocation7 [shape = 'u8[32768]{0}', space=vmem, size = 0x8000, scoped, tag = 'input window, operand 5, single buffered']
    #allocation8 [shape = 'u8[4096]{0}', space=vmem, size = 0x1000, scoped, tag = 'output window, operand 0, single buffered']
    %14 = vsyncpa [#allocation3], 0
    %15 = vsyncpa [#allocation6], 0
    %16 = vsyncpa [#allocation4], 0
    // Predicated region
    $region2: #{tpu_custom_call.1} parent=1 // pred_check
      _
    $region3: #{tpu_custom_call.1} parent=1 // pred_check_branch
      %18 = sbr.rel (0) target = $region5
    $region4: #{tpu_custom_call.1} parent=1 // pred_region
      %20 = vsyncadd [#allocation3], 0
      %s22 = sshll.u32 %s0, 4
      %s23 = int_to_ptr.hbm [resolvable:$true] %s22
      %s24 = sshll.u32 [#allocation2], 4
      %s25 = int_to_ptr.vmem [resolvable:$true] %s24
      %27 = dma.hbm_to_vmem [thread:$0]  %s23, 448, %s25, [#allocation3]
    $region5: #{tpu_custom_call.1} parent=1 // pred_fallthru
      _
    // Predicated region
    $region6: #{tpu_custom_call.1} parent=1 // pred_check
      _
    $region7: #{tpu_custom_call.1} parent=1 // pred_check_branch
      %29 = sbr.rel (0) target = $region9
    $region8: #{tpu_custom_call.1} parent=1 // pred_region
      %31 = vsyncadd [#allocation6], 0
      %s32 = sshll.u32 %s1, 4
      %s33 = int_to_ptr.hbm [resolvable:$true] %s32
      %s34 = sshll.u32 [#allocation5], 4
      %s35 = int_to_ptr.vmem [resolvable:$true] %s34
      %40 = dma.hbm_to_vmem [thread:$0]  %s33, 7168, %s35, [#allocation6], 64, 64, 4
    $region9: #{tpu_custom_call.1} parent=1 // pred_fallthru
      _
    // Predicated region
    $region10: #{tpu_custom_call.1} parent=1 // pred_check
      _
    $region11: #{tpu_custom_call.1} parent=1 // pred_check_branch
      %42 = sbr.rel (0) target = $region13
    $region12: #{tpu_custom_call.1} parent=1 // pred_region
      _
    $region13: #{tpu_custom_call.1} parent=1 // pred_fallthru
      _
    // Predicated region
    $region14: #{tpu_custom_call.1} parent=1 // pred_check
      _
    $region15: #{tpu_custom_call.1} parent=1 // pred_check_branch
      %44 = sbr.rel (0) target = $region17
    $region16: #{tpu_custom_call.1} parent=1 // pred_region
      _
    $region17: #{tpu_custom_call.1} parent=1 // pred_fallthru
      _
    // Predicated region
    $region18: #{tpu_custom_call.1} parent=1 // pred_check
      _
    $region19: #{tpu_custom_call.1} parent=1 // pred_check_branch
      %46 = sbr.rel (0) target = $region21
    $region20: #{tpu_custom_call.1} parent=1 // pred_region
      _
    $region21: #{tpu_custom_call.1} parent=1 // pred_fallthru
      _
    // Predicated region
    $region22: #{tpu_custom_call.1} parent=1 // pred_check
      _
    $region23: #{tpu_custom_call.1} parent=1 // pred_check_branch
      %48 = sbr.rel (0) target = $region25
    $region24: #{tpu_custom_call.1} parent=1 // pred_region
      %50 = vsyncadd [#allocation6], 0
      %s51 = sshll.u32 %s5, 4
      %s52 = int_to_ptr.hbm [resolvable:$true] %s51
      %s53 = sshll.u32 [#allocation7], 4
      %s54 = int_to_ptr.vmem [resolvable:$true] %s53
      %59 = dma.hbm_to_vmem [thread:$0]  %s52, 1024, %s54, [#allocation6], 64, 64, 4
    $region25: #{tpu_custom_call.1} parent=1 // pred_fallthru
      _
    // Predicated region
    $region26: #{tpu_custom_call.1} parent=1 // pred_check
      _
    $region27: #{tpu_custom_call.1} parent=1 // pred_check_branch
      %61 = sbr.rel (0) target = $region29
    $region28: #{tpu_custom_call.1} parent=1 // pred_region
      _
    $region29: #{tpu_custom_call.1} parent=1 // pred_fallthru
      _
    // Predicated region
    $region30: #{tpu_custom_call.1} parent=1 // pred_check
      _
    $region31: #{tpu_custom_call.1} parent=1 // pred_check_branch
      %63 = sbr.rel (0) target = $region33
    $region32: #{tpu_custom_call.1} parent=1 // pred_region
      _
    $region33: #{tpu_custom_call.1} parent=1 // pred_fallthru
      _
    // Predicated region
    $region34: #{tpu_custom_call.1} parent=1 // pred_check
      _
    $region35: #{tpu_custom_call.1} parent=1 // pred_check_branch
      %65 = sbr.rel (0) target = $region37
    $region36: #{tpu_custom_call.1} parent=1 // pred_region
      _
    $region37: #{tpu_custom_call.1} parent=1 // pred_fallthru
      _
    // Predicated region
    $region38: #{tpu_custom_call.1} parent=1 // pred_check
      _
    $region39: #{tpu_custom_call.1} parent=1 // pred_check_branch
      %67 = sbr.rel (0) target = $region41
    $region40: #{tpu_custom_call.1} parent=1 // pred_region
      %69 = dma.done [#allocation3], 448
    $region41: #{tpu_custom_call.1} parent=1 // pred_fallthru
      _
    // Predicated region
    $region42: #{tpu_custom_call.1} parent=1 // pred_check
      _
    $region43: #{tpu_custom_call.1} parent=1 // pred_check_branch
      %71 = sbr.rel (0) target = $region45
    $region44: #{tpu_custom_call.1} parent=1 // pred_region
      %73 = dma.done [#allocation6], 7168
    $region45: #{tpu_custom_call.1} parent=1 // pred_fallthru
      _
    // Predicated region
    $region46: #{tpu_custom_call.1} parent=1 // pred_check
      _
    $region47: #{tpu_custom_call.1} parent=1 // pred_check_branch
      %75 = sbr.rel (0) target = $region49
    $region48: #{tpu_custom_call.1} parent=1 // pred_region
      %77 = dma.done [#allocation6], 1024
    $region49: #{tpu_custom_call.1} parent=1 // pred_fallthru
      _
    %v78 = vld [vmem:[#allocation2] sm:$0xff]
    %v79 = vld [vmem:[#allocation2 + $0x8] sm:$0xff]
    %v80 = vld [vmem:[#allocation2 + $0x10] sm:$0xff]
    %v81 = vld [vmem:[#allocation2 + $0x18] sm:$0xf]
    %v82 = vld [vmem:[#allocation5] sm:$0xf]
    %v83 = vld [vmem:[#allocation5 + $0x4] sm:$0xf]
    %v84 = vld [vmem:[#allocation5 + $0x8] sm:$0xf]
    %v85 = vld [vmem:[#allocation5 + $0xc] sm:$0xf]
    %v86 = vld [vmem:[#allocation5 + $0x10] sm:$0xf]
    %v87 = vld [vmem:[#allocation5 + $0x14] sm:$0xf]
    %v88 = vld [vmem:[#allocation5 + $0x18] sm:$0xf]
    %v89 = vld [vmem:[#allocation5 + $0x1c] sm:$0xf]
    %v90 = vld [vmem:[#allocation5 + $0x20] sm:$0xf]
    %v91 = vld [vmem:[#allocation5 + $0x24] sm:$0xf]
    %v92 = vld [vmem:[#allocation5 + $0x28] sm:$0xf]
    %v93 = vld [vmem:[#allocation5 + $0x2c] sm:$0xf]
    %v94 = vld [vmem:[#allocation5 + $0x30] sm:$0xf]
    %v95 = vld [vmem:[#allocation5 + $0x34] sm:$0xf]
    %v96 = vld [vmem:[#allocation5 + $0x38] sm:$0xf]
    %v97 = vld [vmem:[#allocation5 + $0x3c] sm:$0xf]
    %v98 = vld [vmem:[#allocation5 + $0x40] sm:$0xf]
    %v99 = vld [vmem:[#allocation5 + $0x44] sm:$0xf]
    %v100 = vld [vmem:[#allocation5 + $0x48] sm:$0xf]
    %v101 = vld [vmem:[#allocation5 + $0x4c] sm:$0xf]
    %v102 = vld [vmem:[#allocation5 + $0x50] sm:$0xf]
    %v103 = vld [vmem:[#allocation5 + $0x54] sm:$0xf]
    %v104 = vld [vmem:[#allocation5 + $0x58] sm:$0xf]
    %v105 = vld [vmem:[#allocation5 + $0x5c] sm:$0xf]
    %v106 = vld [vmem:[#allocation5 + $0x60] sm:$0xf]
    %v107 = vld [vmem:[#allocation5 + $0x64] sm:$0xf]
    %v108 = vld [vmem:[#allocation5 + $0x68] sm:$0xf]
    %v109 = vld [vmem:[#allocation5 + $0x6c] sm:$0xf]
    %v110 = vld [vmem:[#allocation5 + $0x70] sm:$0xf]
    %v111 = vld [vmem:[#allocation5 + $0x74] sm:$0xf]
    %v112 = vld [vmem:[#allocation5 + $0x78] sm:$0xf]
    %v113 = vld [vmem:[#allocation5 + $0x7c] sm:$0xf]
    %v114 = vld [vmem:[#allocation5 + $0x80] sm:$0xf]
    %v115 = vld [vmem:[#allocation5 + $0x84] sm:$0xf]
    %v116 = vld [vmem:[#allocation5 + $0x88] sm:$0xf]
    %v117 = vld [vmem:[#allocation5 + $0x8c] sm:$0xf]
    %v118 = vld [vmem:[#allocation5 + $0x90] sm:$0xf]
    %v119 = vld [vmem:[#allocation5 + $0x94] sm:$0xf]
    %v120 = vld [vmem:[#allocation5 + $0x98] sm:$0xf]
    %v121 = vld [vmem:[#allocation5 + $0x9c] sm:$0xf]
    %v122 = vld [vmem:[#allocation5 + $0xa0] sm:$0xf]
    %v123 = vld [vmem:[#allocation5 + $0xa4] sm:$0xf]
    %v124 = vld [vmem:[#allocation5 + $0xa8] sm:$0xf]
    %v125 = vld [vmem:[#allocation5 + $0xac] sm:$0xf]
    %v126 = vld [vmem:[#allocation5 + $0xb0] sm:$0xf]
    %v127 = vld [vmem:[#allocation5 + $0xb4] sm:$0xf]
    %v128 = vld [vmem:[#allocation5 + $0xb8] sm:$0xf]
    %v129 = vld [vmem:[#allocation5 + $0xbc] sm:$0xf]
    %v130 = vld [vmem:[#allocation5 + $0xc0] sm:$0xf]
    %v131 = vld [vmem:[#allocation5 + $0xc4] sm:$0xf]
    %v132 = vld [vmem:[#allocation5 + $0xc8] sm:$0xf]
    %v133 = vld [vmem:[#allocation5 + $0xcc] sm:$0xf]
    %v134 = vld [vmem:[#allocation5 + $0xd0] sm:$0xf]
    %v135 = vld [vmem:[#allocation5 + $0xd4] sm:$0xf]
    %v136 = vld [vmem:[#allocation5 + $0xd8] sm:$0xf]
    %v137 = vld [vmem:[#allocation5 + $0xdc] sm:$0xf]
    %v138 = vld [vmem:[#allocation5 + $0xe0] sm:$0xf]
    %v139 = vld [vmem:[#allocation5 + $0xe4] sm:$0xf]
    %v140 = vld [vmem:[#allocation5 + $0xe8] sm:$0xf]
    %v141 = vld [vmem:[#allocation5 + $0xec] sm:$0xf]
    %v142 = vld [vmem:[#allocation5 + $0xf0] sm:$0xf]
    %v143 = vld [vmem:[#allocation5 + $0xf4] sm:$0xf]
    %v144 = vld [vmem:[#allocation5 + $0xf8] sm:$0xf]
    %v145 = vld [vmem:[#allocation5 + $0xfc] sm:$0xf]
    %v146 = vld [vmem:[#allocation5 + $0x100] sm:$0xf]
    %v147 = vld [vmem:[#allocation5 + $0x104] sm:$0xf]
    %v148 = vld [vmem:[#allocation5 + $0x108] sm:$0xf]
    %v149 = vld [vmem:[#allocation5 + $0x10c] sm:$0xf]
    %v150 = vld [vmem:[#allocation5 + $0x110] sm:$0xf]
    %v151 = vld [vmem:[#allocation5 + $0x114] sm:$0xf]
    %v152 = vld [vmem:[#allocation5 + $0x118] sm:$0xf]
    %v153 = vld [vmem:[#allocation5 + $0x11c] sm:$0xf]
    %v154 = vld [vmem:[#allocation5 + $0x120] sm:$0xf]
    %v155 = vld [vmem:[#allocation5 + $0x124] sm:$0xf]
    %v156 = vld [vmem:[#allocation5 + $0x128] sm:$0xf]
    %v157 = vld [vmem:[#allocation5 + $0x12c] sm:$0xf]
    %v158 = vld [vmem:[#allocation5 + $0x130] sm:$0xf]
    %v159 = vld [vmem:[#allocation5 + $0x134] sm:$0xf]
    %v160 = vld [vmem:[#allocation5 + $0x138] sm:$0xf]
    %v161 = vld [vmem:[#allocation5 + $0x13c] sm:$0xf]
    %v162 = vld [vmem:[#allocation5 + $0x140] sm:$0xf]
    %v163 = vld [vmem:[#allocation5 + $0x144] sm:$0xf]
    %v164 = vld [vmem:[#allocation5 + $0x148] sm:$0xf]
    %v165 = vld [vmem:[#allocation5 + $0x14c] sm:$0xf]
    %v166 = vld [vmem:[#allocation5 + $0x150] sm:$0xf]
    %v167 = vld [vmem:[#allocation5 + $0x154] sm:$0xf]
    %v168 = vld [vmem:[#allocation5 + $0x158] sm:$0xf]
    %v169 = vld [vmem:[#allocation5 + $0x15c] sm:$0xf]
    %v170 = vld [vmem:[#allocation5 + $0x160] sm:$0xf]
    %v171 = vld [vmem:[#allocation5 + $0x164] sm:$0xf]
    %v172 = vld [vmem:[#allocation5 + $0x168] sm:$0xf]
    %v173 = vld [vmem:[#allocation5 + $0x16c] sm:$0xf]
    %v174 = vld [vmem:[#allocation5 + $0x170] sm:$0xf]
    %v175 = vld [vmem:[#allocation5 + $0x174] sm:$0xf]
    %v176 = vld [vmem:[#allocation5 + $0x178] sm:$0xf]
    %v177 = vld [vmem:[#allocation5 + $0x17c] sm:$0xf]
    %v178 = vld [vmem:[#allocation5 + $0x180] sm:$0xf]
    %v179 = vld [vmem:[#allocation5 + $0x184] sm:$0xf]
    %v180 = vld [vmem:[#allocation5 + $0x188] sm:$0xf]
    %v181 = vld [vmem:[#allocation5 + $0x18c] sm:$0xf]
    %v182 = vld [vmem:[#allocation5 + $0x190] sm:$0xf]
    %v183 = vld [vmem:[#allocation5 + $0x194] sm:$0xf]
    %v184 = vld [vmem:[#allocation5 + $0x198] sm:$0xf]
    %v185 = vld [vmem:[#allocation5 + $0x19c] sm:$0xf]
    %v186 = vld [vmem:[#allocation5 + $0x1a0] sm:$0xf]
    %v187 = vld [vmem:[#allocation5 + $0x1a4] sm:$0xf]
    %v188 = vld [vmem:[#allocation5 + $0x1a8] sm:$0xf]
    %v189 = vld [vmem:[#allocation5 + $0x1ac] sm:$0xf]
    %v190 = vld [vmem:[#allocation5 + $0x1b0] sm:$0xf]
    %v191 = vld [vmem:[#allocation5 + $0x1b4] sm:$0xf]
    %v192 = vld [vmem:[#allocation5 + $0x1b8] sm:$0xf]
    %v193 = vld [vmem:[#allocation5 + $0x1bc] sm:$0xf]
    %v194 = vld [vmem:[%s2] sm:$0x1]
    %v196 = vperm.slane %v194, 0
    %v202 = vunpack.c.l.b16 %v78
    %v203 = vunpack.c.h.b16 %v78
    %v204 = vunpack.c.l.b16 %v79
    %v205 = vunpack.c.h.b16 %v79
    %v206 = vunpack.c.l.b16 %v80
    %v207 = vunpack.c.h.b16 %v80
    %v208 = vunpack.c.l.b16 %v81
    %v209 = vpack.c.b16 %v202, %v202
    %v210 = vpack.c.b16 %v203, %v203
    %v211 = vpack.c.b16 %v204, %v204
    %v212 = vpack.c.b16 %v205, %v205
    %v213 = vpack.c.b16 %v206, %v206
    %v214 = vpack.c.b16 %v207, %v207
    %v215 = vpack.c.b16 %v208, %v208
    %v335 = vunpack.c.l.b16 %v82
    %v336 = vunpack.c.l.b16 %v83
    %v337 = vunpack.c.l.b16 %v84
    %v338 = vunpack.c.l.b16 %v85
    %v339 = vunpack.c.l.b16 %v86
    %v340 = vunpack.c.l.b16 %v87
    %v341 = vunpack.c.l.b16 %v88
    %v342 = vunpack.c.l.b16 %v89
    %v343 = vunpack.c.l.b16 %v90
    %v344 = vunpack.c.l.b16 %v91
    %v345 = vunpack.c.l.b16 %v92
    %v346 = vunpack.c.l.b16 %v93
    %v347 = vunpack.c.l.b16 %v94
    %v348 = vunpack.c.l.b16 %v95
    %v349 = vunpack.c.l.b16 %v96
    %v350 = vunpack.c.l.b16 %v97
    %v351 = vunpack.c.l.b16 %v98
    %v352 = vunpack.c.l.b16 %v99
    %v353 = vunpack.c.l.b16 %v100
    %v354 = vunpack.c.l.b16 %v101
    %v355 = vunpack.c.l.b16 %v102
    %v356 = vunpack.c.l.b16 %v103
    %v357 = vunpack.c.l.b16 %v104
    %v358 = vunpack.c.l.b16 %v105
    %v359 = vunpack.c.l.b16 %v106
    %v360 = vunpack.c.l.b16 %v107
    %v361 = vunpack.c.l.b16 %v108
    %v362 = vunpack.c.l.b16 %v109
    %v363 = vunpack.c.l.b16 %v110
    %v364 = vunpack.c.l.b16 %v111
    %v365 = vunpack.c.l.b16 %v112
    %v366 = vunpack.c.l.b16 %v113
    %v367 = vunpack.c.l.b16 %v114
    %v368 = vunpack.c.l.b16 %v115
    %v369 = vunpack.c.l.b16 %v116
    %v370 = vunpack.c.l.b16 %v117
    %v371 = vunpack.c.l.b16 %v118
    %v372 = vunpack.c.l.b16 %v119
    %v373 = vunpack.c.l.b16 %v120
    %v374 = vunpack.c.l.b16 %v121
    %v375 = vunpack.c.l.b16 %v122
    %v376 = vunpack.c.l.b16 %v123
    %v377 = vunpack.c.l.b16 %v124
    %v378 = vunpack.c.l.b16 %v125
    %v379 = vunpack.c.l.b16 %v126
    %v380 = vunpack.c.l.b16 %v127
    %v381 = vunpack.c.l.b16 %v128
    %v382 = vunpack.c.l.b16 %v129
    %v383 = vunpack.c.l.b16 %v130
    %v384 = vunpack.c.l.b16 %v131
    %v385 = vunpack.c.l.b16 %v132
    %v386 = vunpack.c.l.b16 %v133
    %v387 = vunpack.c.l.b16 %v134
    %v388 = vunpack.c.l.b16 %v135
    %v389 = vunpack.c.l.b16 %v136
    %v390 = vunpack.c.l.b16 %v137
    %v391 = vunpack.c.l.b16 %v138
    %v392 = vunpack.c.l.b16 %v139
    %v393 = vunpack.c.l.b16 %v140
    %v394 = vunpack.c.l.b16 %v141
    %v395 = vunpack.c.l.b16 %v142
    %v396 = vunpack.c.l.b16 %v143
    %v397 = vunpack.c.l.b16 %v144
    %v398 = vunpack.c.l.b16 %v145
    %v399 = vunpack.c.l.b16 %v146
    %v400 = vunpack.c.l.b16 %v147
    %v401 = vunpack.c.l.b16 %v148
    %v402 = vunpack.c.l.b16 %v149
    %v403 = vunpack.c.l.b16 %v150
    %v404 = vunpack.c.l.b16 %v151
    %v405 = vunpack.c.l.b16 %v152
    %v406 = vunpack.c.l.b16 %v153
    %v407 = vunpack.c.l.b16 %v154
    %v408 = vunpack.c.l.b16 %v155
    %v409 = vunpack.c.l.b16 %v156
    %v410 = vunpack.c.l.b16 %v157
    %v411 = vunpack.c.l.b16 %v158
    %v412 = vunpack.c.l.b16 %v159
    %v413 = vunpack.c.l.b16 %v160
    %v414 = vunpack.c.l.b16 %v161
    %v415 = vunpack.c.l.b16 %v162
    %v416 = vunpack.c.l.b16 %v163
    %v417 = vunpack.c.l.b16 %v164
    %v418 = vunpack.c.l.b16 %v165
    %v419 = vunpack.c.l.b16 %v166
    %v420 = vunpack.c.l.b16 %v167
    %v421 = vunpack.c.l.b16 %v168
    %v422 = vunpack.c.l.b16 %v169
    %v423 = vunpack.c.l.b16 %v170
    %v424 = vunpack.c.l.b16 %v171
    %v425 = vunpack.c.l.b16 %v172
    %v426 = vunpack.c.l.b16 %v173
    %v427 = vunpack.c.l.b16 %v174
    %v428 = vunpack.c.l.b16 %v175
    %v429 = vunpack.c.l.b16 %v176
    %v430 = vunpack.c.l.b16 %v177
    %v431 = vunpack.c.l.b16 %v178
    %v432 = vunpack.c.l.b16 %v179
    %v433 = vunpack.c.l.b16 %v180
    %v434 = vunpack.c.l.b16 %v181
    %v435 = vunpack.c.l.b16 %v182
    %v436 = vunpack.c.l.b16 %v183
    %v437 = vunpack.c.l.b16 %v184
    %v438 = vunpack.c.l.b16 %v185
    %v439 = vunpack.c.l.b16 %v186
    %v440 = vunpack.c.l.b16 %v187
    %v441 = vunpack.c.l.b16 %v188
    %v442 = vunpack.c.l.b16 %v189
    %v443 = vunpack.c.l.b16 %v190
    %v444 = vunpack.c.l.b16 %v191
    %v445 = vunpack.c.l.b16 %v192
    %v446 = vunpack.c.l.b16 %v193
    %v447 = vpack.c.b16 %v336, %v335
    %v448 = vpack.c.b16 %v338, %v337
    %v449 = vpack.c.b16 %v340, %v339
    %v450 = vpack.c.b16 %v342, %v341
    %v451 = vpack.c.b16 %v344, %v343
    %v452 = vpack.c.b16 %v346, %v345
    %v453 = vpack.c.b16 %v348, %v347
    %v454 = vpack.c.b16 %v350, %v349
    %v455 = vpack.c.b16 %v352, %v351
    %v456 = vpack.c.b16 %v354, %v353
    %v457 = vpack.c.b16 %v356, %v355
    %v458 = vpack.c.b16 %v358, %v357
    %v459 = vpack.c.b16 %v360, %v359
    %v460 = vpack.c.b16 %v362, %v361
    %v461 = vpack.c.b16 %v364, %v363
    %v462 = vpack.c.b16 %v366, %v365
    %v463 = vpack.c.b16 %v368, %v367
    %v464 = vpack.c.b16 %v370, %v369
    %v465 = vpack.c.b16 %v372, %v371
    %v466 = vpack.c.b16 %v374, %v373
    %v467 = vpack.c.b16 %v376, %v375
    %v468 = vpack.c.b16 %v378, %v377
    %v469 = vpack.c.b16 %v380, %v379
    %v470 = vpack.c.b16 %v382, %v381
    %v471 = vpack.c.b16 %v384, %v383
    %v472 = vpack.c.b16 %v386, %v385
    %v473 = vpack.c.b16 %v388, %v387
    %v474 = vpack.c.b16 %v390, %v389
    %v475 = vpack.c.b16 %v392, %v391
    %v476 = vpack.c.b16 %v394, %v393
    %v477 = vpack.c.b16 %v396, %v395
    %v478 = vpack.c.b16 %v398, %v397
    %v479 = vpack.c.b16 %v400, %v399
    %v480 = vpack.c.b16 %v402, %v401
    %v481 = vpack.c.b16 %v404, %v403
    %v482 = vpack.c.b16 %v406, %v405
    %v483 = vpack.c.b16 %v408, %v407
    %v484 = vpack.c.b16 %v410, %v409
    %v485 = vpack.c.b16 %v412, %v411
    %v486 = vpack.c.b16 %v414, %v413
    %v487 = vpack.c.b16 %v416, %v415
    %v488 = vpack.c.b16 %v418, %v417
    %v489 = vpack.c.b16 %v420, %v419
    %v490 = vpack.c.b16 %v422, %v421
    %v491 = vpack.c.b16 %v424, %v423
    %v492 = vpack.c.b16 %v426, %v425
    %v493 = vpack.c.b16 %v428, %v427
    %v494 = vpack.c.b16 %v430, %v429
    %v495 = vpack.c.b16 %v432, %v431
    %v496 = vpack.c.b16 %v434, %v433
    %v497 = vpack.c.b16 %v436, %v435
    %v498 = vpack.c.b16 %v438, %v437
    %v499 = vpack.c.b16 %v440, %v439
    %v500 = vpack.c.b16 %v442, %v441
    %v501 = vpack.c.b16 %v444, %v443
    %v502 = vpack.c.b16 %v446, %v445
    %559 = vmatpush.bf16.msra.mxu0 %v454
    %560 = vmatpush.bf16.msra.mxu0 %v453
    %561 = vmatpush.bf16.msra.mxu0 %v452
    %562 = vmatpush.bf16.msra.mxu0 %v451
    %563 = vmatpush.bf16.msra.mxu0 %v450
    %564 = vmatpush.bf16.msra.mxu0 %v449
    %565 = vmatpush.bf16.msra.mxu0 %v448
    %566 = vmatpush.bf16.msra.mxu0 %v447
    %567 = vmatmul.bf16.gmra.mxu0 %v209
    %v568 = vpop.f32.mrf.mxu0
    %v569 = vadd.f32 %v196, %v568
    %v570 = vpop.f32.mrf.mxu0
    %571 = vdwg.mxu0
    %572 = vmatpush.bf16.msra.mxu0 %v462
    %573 = vmatpush.bf16.msra.mxu0 %v461
    %574 = vmatpush.bf16.msra.mxu0 %v460
    %575 = vmatpush.bf16.msra.mxu0 %v459
    %576 = vmatpush.bf16.msra.mxu0 %v458
    %577 = vmatpush.bf16.msra.mxu0 %v457
    %578 = vmatpush.bf16.msra.mxu0 %v456
    %579 = vmatpush.bf16.msra.mxu0 %v455
    %580 = vmatmul.bf16.gmra.mxu0 %v210
    %v581 = vpop.f32.mrf.mxu0
    %v582 = vadd.f32 %v569, %v581
    %v583 = vpop.f32.mrf.mxu0
    %584 = vdwg.mxu0
    %585 = vmatpush.bf16.msra.mxu0 %v470
    %586 = vmatpush.bf16.msra.mxu0 %v469
    %587 = vmatpush.bf16.msra.mxu0 %v468
    %588 = vmatpush.bf16.msra.mxu0 %v467
    %589 = vmatpush.bf16.msra.mxu0 %v466
    %590 = vmatpush.bf16.msra.mxu0 %v465
    %591 = vmatpush.bf16.msra.mxu0 %v464
    %592 = vmatpush.bf16.msra.mxu0 %v463
    %593 = vmatmul.bf16.gmra.mxu0 %v211
    %v594 = vpop.f32.mrf.mxu0
    %v595 = vadd.f32 %v582, %v594
    %v596 = vpop.f32.mrf.mxu0
    %597 = vdwg.mxu0
    %598 = vmatpush.bf16.msra.mxu0 %v478
    %599 = vmatpush.bf16.msra.mxu0 %v477
    %600 = vmatpush.bf16.msra.mxu0 %v476
    %601 = vmatpush.bf16.msra.mxu0 %v475
    %602 = vmatpush.bf16.msra.mxu0 %v474
    %603 = vmatpush.bf16.msra.mxu0 %v473
    %604 = vmatpush.bf16.msra.mxu0 %v472
    %605 = vmatpush.bf16.msra.mxu0 %v471
    %606 = vmatmul.bf16.gmra.mxu0 %v212
    %v607 = vpop.f32.mrf.mxu0
    %v608 = vadd.f32 %v595, %v607
    %v609 = vpop.f32.mrf.mxu0
    %610 = vdwg.mxu0
    %611 = vmatpush.bf16.msra.mxu0 %v486
    %612 = vmatpush.bf16.msra.mxu0 %v485
    %613 = vmatpush.bf16.msra.mxu0 %v484
    %614 = vmatpush.bf16.msra.mxu0 %v483
    %615 = vmatpush.bf16.msra.mxu0 %v482
    %616 = vmatpush.bf16.msra.mxu0 %v481
    %617 = vmatpush.bf16.msra.mxu0 %v480
    %618 = vmatpush.bf16.msra.mxu0 %v479
    %619 = vmatmul.bf16.gmra.mxu0 %v213
    %v620 = vpop.f32.mrf.mxu0
    %v621 = vadd.f32 %v608, %v620
    %v622 = vpop.f32.mrf.mxu0
    %623 = vdwg.mxu0
    %624 = vmatpush.bf16.msra.mxu0 %v494
    %625 = vmatpush.bf16.msra.mxu0 %v493
    %626 = vmatpush.bf16.msra.mxu0 %v492
    %627 = vmatpush.bf16.msra.mxu0 %v491
    %628 = vmatpush.bf16.msra.mxu0 %v490
    %629 = vmatpush.bf16.msra.mxu0 %v489
    %630 = vmatpush.bf16.msra.mxu0 %v488
    %631 = vmatpush.bf16.msra.mxu0 %v487
    %632 = vmatmul.bf16.gmra.mxu0 %v214
    %v633 = vpop.f32.mrf.mxu0
    %v634 = vadd.f32 %v621, %v633
    %v635 = vpop.f32.mrf.mxu0
    %636 = vdwg.mxu0
    %637 = vmatpush.bf16.msra.mxu0 %v502
    %638 = vmatpush.bf16.msra.mxu0 %v501
    %639 = vmatpush.bf16.msra.mxu0 %v500
    %640 = vmatpush.bf16.msra.mxu0 %v499
    %641 = vmatpush.bf16.msra.mxu0 %v498
    %642 = vmatpush.bf16.msra.mxu0 %v497
    %643 = vmatpush.bf16.msra.mxu0 %v496
    %644 = vmatpush.bf16.msra.mxu0 %v495
    %645 = vmatmul.bf16.gmra.mxu0 %v215
    %v646 = vpop.f32.mrf.mxu0
    %v647 = vadd.f32 %v634, %v646
    %v648 = vpop.f32.mrf.mxu0
    %649 = vdwg.mxu0
    %v650 = vmax.f32 %v647, 0.0
    %v651 = vpack.c.bf16 %v650, %v650
    %v652 = vld [vmem:[%s3] sm:$0xf]
    %v653 = vld [vmem:[%s3 + $0x4] sm:$0xf]
    %v654 = vld [vmem:[%s3 + $0x8] sm:$0xf]
    %v655 = vld [vmem:[%s3 + $0xc] sm:$0xf]
    %v656 = vld [vmem:[%s3 + $0x10] sm:$0xf]
    %v657 = vld [vmem:[%s3 + $0x14] sm:$0xf]
    %v658 = vld [vmem:[%s3 + $0x18] sm:$0xf]
    %v659 = vld [vmem:[%s3 + $0x1c] sm:$0xf]
    %v660 = vld [vmem:[%s3 + $0x20] sm:$0xf]
    %v661 = vld [vmem:[%s3 + $0x24] sm:$0xf]
    %v662 = vld [vmem:[%s3 + $0x28] sm:$0xf]
    %v663 = vld [vmem:[%s3 + $0x2c] sm:$0xf]
    %v664 = vld [vmem:[%s3 + $0x30] sm:$0xf]
    %v665 = vld [vmem:[%s3 + $0x34] sm:$0xf]
    %v666 = vld [vmem:[%s3 + $0x38] sm:$0xf]
    %v667 = vld [vmem:[%s3 + $0x3c] sm:$0xf]
    %v668 = vld [vmem:[%s4] sm:$0x1]
    %v670 = vperm.slane %v668, 0
    %v688 = vunpack.c.l.b16 %v652
    %v689 = vunpack.c.l.b16 %v653
    %v690 = vunpack.c.l.b16 %v654
    %v691 = vunpack.c.l.b16 %v655
    %v692 = vunpack.c.l.b16 %v656
    %v693 = vunpack.c.l.b16 %v657
    %v694 = vunpack.c.l.b16 %v658
    %v695 = vunpack.c.l.b16 %v659
    %v696 = vunpack.c.l.b16 %v660
    %v697 = vunpack.c.l.b16 %v661
    %v698 = vunpack.c.l.b16 %v662
    %v699 = vunpack.c.l.b16 %v663
    %v700 = vunpack.c.l.b16 %v664
    %v701 = vunpack.c.l.b16 %v665
    %v702 = vunpack.c.l.b16 %v666
    %v703 = vunpack.c.l.b16 %v667
    %v704 = vpack.c.b16 %v689, %v688
    %v705 = vpack.c.b16 %v691, %v690
    %v706 = vpack.c.b16 %v693, %v692
    %v707 = vpack.c.b16 %v695, %v694
    %v708 = vpack.c.b16 %v697, %v696
    %v709 = vpack.c.b16 %v699, %v698
    %v710 = vpack.c.b16 %v701, %v700
    %v711 = vpack.c.b16 %v703, %v702
    %720 = vmatpush.bf16.msra.mxu0 %v711
    %721 = vmatpush.bf16.msra.mxu0 %v710
    %722 = vmatpush.bf16.msra.mxu0 %v709
    %723 = vmatpush.bf16.msra.mxu0 %v708
    %724 = vmatpush.bf16.msra.mxu0 %v707
    %725 = vmatpush.bf16.msra.mxu0 %v706
    %726 = vmatpush.bf16.msra.mxu0 %v705
    %727 = vmatpush.bf16.msra.mxu0 %v704
    %728 = vmatmul.bf16.gmra.mxu0 %v651
    %v729 = vpop.f32.mrf.mxu0
    %v730 = vadd.f32 %v670, %v729
    %v731 = vpop.f32.mrf.mxu0
    %732 = vdwg.mxu0
    %v733 = vmax.f32 %v730, 0.0
    %v734 = vpack.c.bf16 %v733, %v733
    %v735 = vld [vmem:[#allocation7] sm:$0xf]
    %v736 = vld [vmem:[#allocation7 + $0x4] sm:$0xf]
    %v737 = vld [vmem:[#allocation7 + $0x8] sm:$0xf]
    %v738 = vld [vmem:[#allocation7 + $0xc] sm:$0xf]
    %v739 = vld [vmem:[#allocation7 + $0x10] sm:$0xf]
    %v740 = vld [vmem:[#allocation7 + $0x14] sm:$0xf]
    %v741 = vld [vmem:[#allocation7 + $0x18] sm:$0xf]
    %v742 = vld [vmem:[#allocation7 + $0x1c] sm:$0xf]
    %v743 = vld [vmem:[#allocation7 + $0x20] sm:$0xf]
    %v744 = vld [vmem:[#allocation7 + $0x24] sm:$0xf]
    %v745 = vld [vmem:[#allocation7 + $0x28] sm:$0xf]
    %v746 = vld [vmem:[#allocation7 + $0x2c] sm:$0xf]
    %v747 = vld [vmem:[#allocation7 + $0x30] sm:$0xf]
    %v748 = vld [vmem:[#allocation7 + $0x34] sm:$0xf]
    %v749 = vld [vmem:[#allocation7 + $0x38] sm:$0xf]
    %v750 = vld [vmem:[#allocation7 + $0x3c] sm:$0xf]
    %v751 = vld [vmem:[%s6] sm:$0x1]
    %v753 = vperm.slane %v751, 0
    %v771 = vunpack.c.l.b16 %v735
    %v772 = vunpack.c.l.b16 %v736
    %v773 = vunpack.c.l.b16 %v737
    %v774 = vunpack.c.l.b16 %v738
    %v775 = vunpack.c.l.b16 %v739
    %v776 = vunpack.c.l.b16 %v740
    %v777 = vunpack.c.l.b16 %v741
    %v778 = vunpack.c.l.b16 %v742
    %v779 = vunpack.c.l.b16 %v743
    %v780 = vunpack.c.l.b16 %v744
    %v781 = vunpack.c.l.b16 %v745
    %v782 = vunpack.c.l.b16 %v746
    %v783 = vunpack.c.l.b16 %v747
    %v784 = vunpack.c.l.b16 %v748
    %v785 = vunpack.c.l.b16 %v749
    %v786 = vunpack.c.l.b16 %v750
    %v787 = vpack.c.b16 %v772, %v771
    %v788 = vpack.c.b16 %v774, %v773
    %v789 = vpack.c.b16 %v776, %v775
    %v790 = vpack.c.b16 %v778, %v777
    %v791 = vpack.c.b16 %v780, %v779
    %v792 = vpack.c.b16 %v782, %v781
    %v793 = vpack.c.b16 %v784, %v783
    %v794 = vpack.c.b16 %v786, %v785
    %803 = vmatpush.bf16.msra.mxu0 %v794
    %804 = vmatpush.bf16.msra.mxu0 %v793
    %805 = vmatpush.bf16.msra.mxu0 %v792
    %806 = vmatpush.bf16.msra.mxu0 %v791
    %807 = vmatpush.bf16.msra.mxu0 %v790
    %808 = vmatpush.bf16.msra.mxu0 %v789
    %809 = vmatpush.bf16.msra.mxu0 %v788
    %810 = vmatpush.bf16.msra.mxu0 %v787
    %811 = vmatmul.bf16.gmra.mxu0 %v734
    %v812 = vpop.f32.mrf.mxu0
    %v813 = vadd.f32 %v753, %v812
    %v814 = vpop.f32.mrf.mxu0
    %815 = vdwg.mxu0
    %v816 = vmax.f32 %v813, 0.0
    %v817 = vpack.c.bf16 %v816, %v816
    %v818 = vld [vmem:[%s7] sm:$0xf]
    %v819 = vld [vmem:[%s7 + $0x4] sm:$0xf]
    %v820 = vld [vmem:[%s7 + $0x8] sm:$0xf]
    %v821 = vld [vmem:[%s7 + $0xc] sm:$0xf]
    %v822 = vld [vmem:[%s7 + $0x10] sm:$0xf]
    %v823 = vld [vmem:[%s7 + $0x14] sm:$0xf]
    %v824 = vld [vmem:[%s7 + $0x18] sm:$0xf]
    %v825 = vld [vmem:[%s7 + $0x1c] sm:$0xf]
    %v826 = vld [vmem:[%s7 + $0x20] sm:$0xf]
    %v827 = vld [vmem:[%s7 + $0x24] sm:$0xf]
    %v828 = vld [vmem:[%s7 + $0x28] sm:$0xf]
    %v829 = vld [vmem:[%s7 + $0x2c] sm:$0xf]
    %v830 = vld [vmem:[%s7 + $0x30] sm:$0xf]
    %v831 = vld [vmem:[%s7 + $0x34] sm:$0xf]
    %v832 = vld [vmem:[%s7 + $0x38] sm:$0xf]
    %v833 = vld [vmem:[%s7 + $0x3c] sm:$0xf]
    %v834 = vld [vmem:[%s8] sm:$0x1]
    %v836 = vperm.slane %v834, 0
    %v854 = vunpack.c.l.b16 %v818
    %v855 = vunpack.c.l.b16 %v819
    %v856 = vunpack.c.l.b16 %v820
    %v857 = vunpack.c.l.b16 %v821
    %v858 = vunpack.c.l.b16 %v822
    %v859 = vunpack.c.l.b16 %v823
    %v860 = vunpack.c.l.b16 %v824
    %v861 = vunpack.c.l.b16 %v825
    %v862 = vunpack.c.l.b16 %v826
    %v863 = vunpack.c.l.b16 %v827
    %v864 = vunpack.c.l.b16 %v828
    %v865 = vunpack.c.l.b16 %v829
    %v866 = vunpack.c.l.b16 %v830
    %v867 = vunpack.c.l.b16 %v831
    %v868 = vunpack.c.l.b16 %v832
    %v869 = vunpack.c.l.b16 %v833
    %v870 = vpack.c.b16 %v855, %v854
    %v871 = vpack.c.b16 %v857, %v856
    %v872 = vpack.c.b16 %v859, %v858
    %v873 = vpack.c.b16 %v861, %v860
    %v874 = vpack.c.b16 %v863, %v862
    %v875 = vpack.c.b16 %v865, %v864
    %v876 = vpack.c.b16 %v867, %v866
    %v877 = vpack.c.b16 %v869, %v868
    %886 = vmatpush.bf16.msra.mxu0 %v877
    %887 = vmatpush.bf16.msra.mxu0 %v876
    %888 = vmatpush.bf16.msra.mxu0 %v875
    %889 = vmatpush.bf16.msra.mxu0 %v874
    %890 = vmatpush.bf16.msra.mxu0 %v873
    %891 = vmatpush.bf16.msra.mxu0 %v872
    %892 = vmatpush.bf16.msra.mxu0 %v871
    %893 = vmatpush.bf16.msra.mxu0 %v870
    %894 = vmatmul.bf16.gmra.mxu0 %v817
    %v895 = vpop.f32.mrf.mxu0
    %v896 = vadd.f32 %v836, %v895
    %v897 = vpop.f32.mrf.mxu0
    %898 = vdwg.mxu0
    %vm899 = vcmask 80896
    %v900 = vsel %vm899, %v896, -inf
    %901 = vmax.xlane.f32.xlu0 %v900
    %v902 = vpop.xlane.xlu0 %901
    %v903 = vsub.f32 %v896, %v902
    %v904 = vmul.f32 %v903, 1.442695
    %v905 = vpow.pop %v904
    %v906 = vsel %vm899, %v905, 0.0
    %907 = vadd.xlane.f32.xlu0 %v906
    %v908 = vpop.xlane.xlu0 %907
    %v909 = vrcp.pop %v908
    %v910 = vmul.f32 %v905, %v909
    %911 = vst.msk [vmem:[#allocation8] sm:$0xff] %vm899, %v910
    // Predicated region
    $region50: #{tpu_custom_call.1} parent=1 // pred_check
      _
    $region51: #{tpu_custom_call.1} parent=1 // pred_check_branch
      %913 = sbr.rel (0) target = $region53
    $region52: #{tpu_custom_call.1} parent=1 // pred_region
      %915 = vsyncadd [#allocation4], 0
      %s917 = sshll.u32 [#allocation8], 4
      %s918 = int_to_ptr.vmem [resolvable:$true] %s917
      %s919 = sshll.u32 %s9, 4
      %s920 = int_to_ptr.hbm [resolvable:$true] %s919
      %922 = dma.vmem_to_hbm [thread:$0]  %s918, 128, %s920, [#allocation4]
    $region53: #{tpu_custom_call.1} parent=1 // pred_fallthru
      _
    // Predicated region
    $region54: #{tpu_custom_call.1} parent=1 // pred_check
      _
    $region55: #{tpu_custom_call.1} parent=1 // pred_check_branch
      %924 = sbr.rel (0) target = $region57
    $region56: #{tpu_custom_call.1} parent=1 // pred_region
      %926 = dma.done [#allocation4], 128
    $region57: #{tpu_custom_call.1} parent=1 // pred_fallthru
      _
    %927 = vsyncpa [#allocation3], 1
    %928 = vsyncpa [#allocation6], 1
    %929 = vsyncpa [#allocation4], 1

</llo_original>
